<compile_context>
chip_gen: v7x
topology: tpu7x:2x2x1
jax: 0.10.0
libtpu: 0.0.40
codegen_flags: <defaults>
</compile_context>

<pallas_src>
import functools

import jax
import jax.numpy as jnp
from jax.experimental import pallas as pl
from jax.experimental.pallas import tpu as pltpu


# Chip detection for the epilogue dtype (Python-level, resolved at trace time).
_DEVICE_KIND = jax.devices()[0].device_kind.lower()
_BF16_EPILOGUE = "v5" not in _DEVICE_KIND  # v5e has no bf16 VPU/EUP path


def _head_kernel(x_ref, w1_ref, b1_ref, w2_ref, b2_ref, o_ref, *, bf16_epilogue):
    # In-kernel cast to bf16 (VPU cast hides under MXU/DMA; avoids a separate
    # HBM cast pass in the wrapper).
    x_bf16 = x_ref[...].astype(jnp.bfloat16)
    # dense + folded BN: (TM, D)bf16 @ (D, H)bf16 -> f32 accumulator
    h = jnp.dot(x_bf16, w1_ref[...], preferred_element_type=jnp.float32)
    if bf16_epilogue:
        # v6e/v7x: bf16 bias-add + tanh halves vreg + VPU/EUP slot pressure.
        h = jnp.tanh((h + b1_ref[...]).astype(jnp.bfloat16))
    else:
        # v5e: f32-only VPU/EUP; cast to bf16 only for the second MXU operand.
        h = jnp.tanh(h + b1_ref[...]).astype(jnp.bfloat16)
    # output projection: (TM, H)bf16 @ (H, Lpad)bf16 -> f32
    out = jnp.dot(h, w2_ref[...], preferred_element_type=jnp.float32)
    o_ref[...] = (out + b2_ref[...]).astype(o_ref.dtype)


def _round_up(v, m):
    return ((v + m - 1) // m) * m


def _vmem_footprint(tm, d, h, lpad):
    """Approximate VMEM bytes for one pipelined step (default buffering)."""
    bytes_x = 2 * tm * d * 4              # f32 input tile, double-buffered
    bytes_o = 2 * tm * lpad * 4           # f32 output tile, double-buffered
    bytes_w = 2 * (d * h * 2 + h * 4 + h * lpad * 2 + lpad * 4)  # resident weights
    bytes_mid = tm * h * 4 + tm * h * 2 + tm * lpad * 4          # acc + bf16 h + acc2
    return bytes_x + bytes_o + bytes_w + bytes_mid


def _pick_tm(m, d, h, lpad):
    # Large tiles amortize per-step overhead, but keep grid >= 4 when M allows
    # it so v7x's two TensorCores both get work via "parallel" semantics.
    tm = min(2048, _round_up(max(pl.cdiv(m, 4), 1), 16), _round_up(m, 8))
    tm = max(tm, 8)
    # Shrink if the working set would blow the VMEM budget.
    while _vmem_footprint(tm, d, h, lpad) > (40 << 20) and tm > 128:
        tm = _round_up(tm // 2, 8)
    return tm


@jax.jit
def classification_head_forward(x, params):
    """x: (B, S, D) float32. Returns (B, S, n_labels) float32."""
    B, S, D = x.shape
    w1 = params["w1"]                   # (D, H)
    b1 = params["b1"]                   # (1, H)
    gamma = params["gamma"]             # (1, H)
    beta = params["beta"]               # (1, H)
    run_mean = params["running_mean"]   # (1, H)
    run_var = params["running_var"]     # (1, H)
    w2 = params["w2"]                   # (H, L)
    b2 = params["b2"]                   # (1, L)
    eps = 1e-5

    H = w1.shape[1]
    L = w2.shape[1]
    M = B * S

    # Fold eval-mode BatchNorm1d into the dense layer (one-time O(D*H) fold).
    scale = gamma / jnp.sqrt(run_var + eps)                 # (1, H)
    w1f = (w1 * scale).astype(jnp.bfloat16)                 # (D, H) bf16 MXU operand
    b1f = (b1 * scale + beta - run_mean * scale).astype(jnp.float32)  # (1, H)

    # Pad the label dim to a lane-dense multiple of 128 for unmasked stores.
    Lpad = _round_up(max(L, 128), 128)
    w2p = jnp.zeros((H, Lpad), jnp.bfloat16).at[:, :L].set(w2.astype(jnp.bfloat16))
    b2p = jnp.zeros((1, Lpad), jnp.float32).at[:, :L].set(b2.astype(jnp.float32))

    # x stays f32 (cast happens in-kernel); reshape (B,S,D)->(M,D) is free.
    x2d = x.reshape(M, D)

    TM = _pick_tm(M, D, H, Lpad)
    grid = (pl.cdiv(M, TM),)            # ragged final tile handled by masking

    footprint = _vmem_footprint(TM, D, H, Lpad)
    vmem_limit = int(min(48 << 20, max(32 << 20, int(1.25 * footprint))))

    out2d = pl.pallas_call(
        functools.partial(_head_kernel, bf16_epilogue=_BF16_EPILOGUE),
        out_shape=jax.ShapeDtypeStruct((M, Lpad), jnp.float32),
        grid_spec=pl.GridSpec(
            grid=grid,
            in_specs=[
                pl.BlockSpec((TM, D), lambda i: (i, 0)),    # x tile, pipelined
                pl.BlockSpec((D, H), lambda i: (0, 0)),     # W1' resident
                pl.BlockSpec((1, H), lambda i: (0, 0)),     # fused bias resident
                pl.BlockSpec((H, Lpad), lambda i: (0, 0)),  # W2 resident
                pl.BlockSpec((1, Lpad), lambda i: (0, 0)),  # b2 resident
            ],
            out_specs=pl.BlockSpec((TM, Lpad), lambda i: (i, 0)),
        ),
        compiler_params=pltpu.CompilerParams(
            dimension_semantics=("parallel",),   # megacore sharding on v7x
            vmem_limit_bytes=vmem_limit,
        ),
    )(x2d, w1f, b1f, w2p, b2p)

    # Slice off the lane padding only (rows are already exactly M).
    return out2d[:, :L].reshape(B, S, L)


def init_params(key, input_size, hidden_size, n_labels):
    ks = jax.random.split(key, 6)
    # nn.Linear-style init (uniform +-1/sqrt(fan_in)), deterministic.
    lim1 = 1.0 / jnp.sqrt(input_size)
    lim2 = 1.0 / jnp.sqrt(hidden_size)
    params = {
        "w1": jax.random.uniform(ks[0], (input_size, hidden_size),
                                 jnp.float32, -lim1, lim1),
        "b1": jax.random.uniform(ks[1], (1, hidden_size),
                                 jnp.float32, -lim1, lim1),
        "gamma": jnp.ones((1, hidden_size), jnp.float32),
        "beta": jnp.zeros((1, hidden_size), jnp.float32),
        # nontrivial running stats so the BN path is exercised
        "running_mean": 0.1 * jax.random.normal(ks[2], (1, hidden_size),
                                                jnp.float32),
        "running_var": 1.0 + 0.1 * jax.random.uniform(ks[3], (1, hidden_size),
                                                      jnp.float32),
        "w2": jax.random.uniform(ks[4], (hidden_size, n_labels),
                                 jnp.float32, -lim2, lim2),
        "b2": jax.random.uniform(ks[5], (1, n_labels),
                                 jnp.float32, -lim2, lim2),
    }
    return params


def reference_forward(x, params):
    """Pure-JAX f32 reference matching the PyTorch eval forward."""
    eps = 1e-5
    h = jnp.einsum("bsd,dh->bsh", x, params["w1"]) + params["b1"][0]
    scale = params["gamma"][0] / jnp.sqrt(params["running_var"][0] + eps)
    shift = params["beta"][0] - params["running_mean"][0] * scale
    h = jnp.tanh(h * scale + shift)
    return jnp.einsum("bsh,hl->bsl", h, params["w2"]) + params["b2"][0]


if __name__ == "__main__":
    B, S = 2, 8
    input_size, hidden_size, n_labels = 32, 64, 4

    key = jax.random.PRNGKey(0)
    k_x, k_p = jax.random.split(key)
    x = jax.random.normal(k_x, (B, S, input_size), jnp.float32)
    params = init_params(k_p, input_size, hidden_size, n_labels)

    out = classification_head_forward(x, params)
    out = jax.block_until_ready(out)

    ref = reference_forward(x, params)
    assert out.shape == (B, S, n_labels)
    # bf16 matmul operands / bf16 tanh intermediate (f32 accumulation) ->
    # loosened tolerance vs the f32 reference.
    assert jnp.allclose(out, ref, atol=2e-2, rtol=2e-2), (
        float(jnp.max(jnp.abs(out - ref))))

    print("KERNEL_OK")
</pallas_src>

<mosaic_0001>
module attributes {stable_mosaic.version = 11 : i64} {
  func.func @_head_kernel(%arg0: i32, %arg1: memref<16x32xf32, #tpu.memory_space<vmem>>, %arg2: memref<32x64xbf16, #tpu.memory_space<vmem>>, %arg3: memref<1x64xf32, #tpu.memory_space<vmem>>, %arg4: memref<64x128xbf16, #tpu.memory_space<vmem>>, %arg5: memref<1x128xf32, #tpu.memory_space<vmem>>, %arg6: memref<16x128xf32, #tpu.memory_space<vmem>>) attributes {dimension_semantics = [#tpu.dimension_semantics<parallel>], iteration_bounds = array<i64: 1>, scalar_prefetch = 0 : i64, scratch_operands = 0 : i64, tpu.core_type = #tpu.core_type<tc>, window_params = [{transform_indices = @transform_0, window_bounds = array<i64: 16, 32>}, {pipeline_mode = #tpu.pipeline_mode<synchronous>, transform_indices = @transform_1, window_bounds = array<i64: 32, 64>}, {pipeline_mode = #tpu.pipeline_mode<synchronous>, transform_indices = @transform_2, window_bounds = array<i64: 1, 64>}, {pipeline_mode = #tpu.pipeline_mode<synchronous>, transform_indices = @transform_3, window_bounds = array<i64: 64, 128>}, {pipeline_mode = #tpu.pipeline_mode<synchronous>, transform_indices = @transform_4, window_bounds = array<i64: 1, 128>}, {transform_indices = @transform_5, window_bounds = array<i64: 16, 128>}]} {
    %c0 = arith.constant 0 : index
    %c0_0 = arith.constant 0 : index
    %0 = vector.load %arg1[%c0, %c0_0] : memref<16x32xf32, #tpu.memory_space<vmem>>, vector<16x32xf32>
    %1 = arith.truncf %0 : vector<16x32xf32> to vector<16x32xbf16>
    %c0_1 = arith.constant 0 : index
    %c0_2 = arith.constant 0 : index
    %2 = vector.load %arg2[%c0_1, %c0_2] : memref<32x64xbf16, #tpu.memory_space<vmem>>, vector<32x64xbf16>
    %cst = arith.constant dense<0.000000e+00> : vector<16x64xf32>
    %3 = tpu.matmul %1, %2, %cst {dimension_numbers = #tpu.dot_dimension_numbers<[1], [0], [0], [1], [0, 0, 1, 1], [], []>} : vector<16x32xbf16>, vector<32x64xbf16>, vector<16x64xf32> -> vector<16x64xf32>
    %c0_3 = arith.constant 0 : index
    %c0_4 = arith.constant 0 : index
    %4 = vector.load %arg3[%c0_3, %c0_4] : memref<1x64xf32, #tpu.memory_space<vmem>>, vector<1x64xf32>
    %5 = vector.broadcast %4 : vector<1x64xf32> to vector<16x64xf32>
    %6 = arith.addf %3, %5 : vector<16x64xf32>
    %7 = arith.truncf %6 : vector<16x64xf32> to vector<16x64xbf16>
    %8 = math.tanh %7 : vector<16x64xbf16>
    %c0_5 = arith.constant 0 : index
    %c0_6 = arith.constant 0 : index
    %9 = vector.load %arg4[%c0_5, %c0_6] : memref<64x128xbf16, #tpu.memory_space<vmem>>, vector<64x128xbf16>
    %cst_7 = arith.constant dense<0.000000e+00> : vector<16x128xf32>
    %10 = tpu.matmul %8, %9, %cst_7 {dimension_numbers = #tpu.dot_dimension_numbers<[1], [0], [0], [1], [0, 0, 1, 1], [], []>} : vector<16x64xbf16>, vector<64x128xbf16>, vector<16x128xf32> -> vector<16x128xf32>
    %c0_8 = arith.constant 0 : index
    %c0_9 = arith.constant 0 : index
    %11 = vector.load %arg5[%c0_8, %c0_9] : memref<1x128xf32, #tpu.memory_space<vmem>>, vector<1x128xf32>
    %12 = vector.broadcast %11 : vector<1x128xf32> to vector<16x128xf32>
    %13 = arith.addf %10, %12 : vector<16x128xf32>
    %c0_10 = arith.constant 0 : index
    %c0_11 = arith.constant 0 : index
    %14 = vector.load %arg6[%c0_10, %c0_11] : memref<16x128xf32, #tpu.memory_space<vmem>>, vector<16x128xf32>
    tpu.vector_store %arg6[%c0_10, %c0_11], %13 {strides = array<i32>} : memref<16x128xf32, #tpu.memory_space<vmem>>, vector<16x128xf32>,
    return
  }
  func.func @transform_0(%arg0: i32) -> (i32, i32) {
    %c0_i32 = arith.constant 0 : i32
    %c0_i32_0 = arith.constant 0 : i32
    return %arg0, %c0_i32 : i32, i32
  }
  func.func @transform_1(%arg0: i32) -> (i32, i32) {
    %c0_i32 = arith.constant 0 : i32
    %c0_i32_0 = arith.constant 0 : i32
    %c0_i32_1 = arith.constant 0 : i32
    return %c0_i32, %c0_i32_0 : i32, i32
  }
  func.func @transform_2(%arg0: i32) -> (i32, i32) {
    %c0_i32 = arith.constant 0 : i32
    %c0_i32_0 = arith.constant 0 : i32
    %c0_i32_1 = arith.constant 0 : i32
    return %c0_i32, %c0_i32_0 : i32, i32
  }
  func.func @transform_3(%arg0: i32) -> (i32, i32) {
    %c0_i32 = arith.constant 0 : i32
    %c0_i32_0 = arith.constant 0 : i32
    %c0_i32_1 = arith.constant 0 : i32
    return %c0_i32, %c0_i32_0 : i32, i32
  }
  func.func @transform_4(%arg0: i32) -> (i32, i32) {
    %c0_i32 = arith.constant 0 : i32
    %c0_i32_0 = arith.constant 0 : i32
    %c0_i32_1 = arith.constant 0 : i32
    return %c0_i32, %c0_i32_0 : i32, i32
  }
  func.func @transform_5(%arg0: i32) -> (i32, i32) {
    %c0_i32 = arith.constant 0 : i32
    %c0_i32_0 = arith.constant 0 : i32
    return %arg0, %c0_i32 : i32, i32
  }
}

</mosaic_0001>

<llo_original>
// kernel: classification_head_forward.1
$region0: #{classification_head_forward.1}
  #allocation0 [shape = 'u32[]', space=smem, size = 0x4, offset = 0x4, fixed_abs, tag = 'smem constant byte address 0x4 - core index']
  #allocation1 [shape = 'u32[144,128]{1,0:T(1,128)}', space=vmem, size = 0x12000, scoped, tag = 'internal scratch']
  %s0 = inlined_call_operand.vmem [shape: f32[16,32], index: 0, kind: input, shape index: {}]
  %s1 = inlined_call_operand.vmem [shape: bf16[32,64], index: 1, kind: input, shape index: {}]
  %s2 = inlined_call_operand.vmem [shape: f32[1,64], index: 2, kind: input, shape index: {}]
  %s3 = inlined_call_operand.vmem [shape: bf16[64,128], index: 3, kind: input, shape index: {}]
  %s4 = inlined_call_operand.vmem [shape: f32[1,128], index: 4, kind: input, shape index: {}]
  %s5 = inlined_call_operand.vmem [shape: f32[16,128], index: 5, kind: output, shape index: {}]
  %s6 = sld [smem:[#allocation0]]
  $region30: #{classification_head_forward.1} parent=0
    _
  %s8 = ssub.s32 1, %s6
  %s9 = scalar_select 0, %s8, %s6
  // Predicated region
  $region2: #{classification_head_forward.1} parent=0 // pred_check
    _
  $region3: #{classification_head_forward.1} parent=0 // pred_check_branch
    %11 = sbr.rel (0) target = $region5
  $region4: #{classification_head_forward.1} parent=0 // pred_region
    _
  $region5: #{classification_head_forward.1} parent=0 // pred_fallthru
    _
  // Predicated region
  $region6: #{classification_head_forward.1} parent=0 // pred_check
    _
  $region7: #{classification_head_forward.1} parent=0 // pred_check_branch
    %13 = sbr.rel (0) target = $region9
  $region8: #{classification_head_forward.1} parent=0 // pred_region
    _
  $region9: #{classification_head_forward.1} parent=0 // pred_fallthru
    _
  // Predicated region
  $region10: #{classification_head_forward.1} parent=0 // pred_check
    _
  $region11: #{classification_head_forward.1} parent=0 // pred_check_branch
    %15 = sbr.rel (0) target = $region13
  $region12: #{classification_head_forward.1} parent=0 // pred_region
    _
  $region13: #{classification_head_forward.1} parent=0 // pred_fallthru
    _
  // Predicated region
  $region14: #{classification_head_forward.1} parent=0 // pred_check
    _
  $region15: #{classification_head_forward.1} parent=0 // pred_check_branch
    %17 = sbr.rel (0) target = $region17
  $region16: #{classification_head_forward.1} parent=0 // pred_region
    _
  $region17: #{classification_head_forward.1} parent=0 // pred_fallthru
    _
  // Predicated region
  $region18: #{classification_head_forward.1} parent=0 // pred_check
    _
  $region19: #{classification_head_forward.1} parent=0 // pred_check_branch
    %19 = sbr.rel (0) target = $region21
  $region20: #{classification_head_forward.1} parent=0 // pred_region
    _
  $region21: #{classification_head_forward.1} parent=0 // pred_fallthru
    _
  %v21 = vld [vmem:[%s0] sm:$0xff]
  %v22 = vld [vmem:[%s0 + $0x8] sm:$0xff]
  %v23 = vpack.c.bf16 %v22, %v21
  %v24 = vld [vmem:[%s1] sm:$0xf]
  %v25 = vld [vmem:[%s1 + $0x4] sm:$0xf]
  %v26 = vld [vmem:[%s1 + $0x8] sm:$0xf]
  %v27 = vld [vmem:[%s1 + $0xc] sm:$0xf]
  %v28 = vld [vmem:[%s2] sm:$0x1]
  %v30 = vlaneseq
  %v31 = vshrl.u32 %v30, 7
  %v32 = vsub.s32 0, %v31
  %v33 = vrot.slane %v28, %v32
  %v39 = vunpack.c.l.b16 %v24
  %v40 = vunpack.c.l.b16 %v25
  %v41 = vunpack.c.l.b16 %v26
  %v42 = vunpack.c.l.b16 %v27
  %v43 = vpack.c.b16 %v40, %v39
  %v44 = vpack.c.b16 %v42, %v41
  %vm47 = vcmask 261120
  %v49 = vsel %vm47, %v23, 0
  %51 = vmatprep.subr.bf16.mxu0 0
  %52 = vmatpush1.bf16.msra.mxu0 %v43
  %53 = vmatprep.subr.bf16.mxu0 0
  %54 = vmatpush1.bf16.msra.mxu0 %v44
  %55 = vmatprep.subr.bf16.mxu0 0
  %56 = vmatpush1.bf16.msra.mxu0 0
  %57 = vmatprep.subr.bf16.mxu0 0
  %58 = vmatpush1.bf16.msra.mxu0 0
  %59 = vmatprep.subr.bf16.mxu0 0
  %60 = vmatpush1.bf16.msra.mxu0 0
  %61 = vmatprep.subr.bf16.mxu0 0
  %62 = vmatpush1.bf16.msra.mxu0 0
  %63 = vmatprep.subr.bf16.mxu0 0
  %64 = vmatpush1.bf16.msra.mxu0 0
  %65 = vmatprep.subr.bf16.mxu0 0
  %66 = vmatpush1.bf16.msra.mxu0 0
  %67 = vmatprep.subr.bf16.mxu0 0
  %68 = vmatpush1.bf16.msra.mxu0 0
  %69 = vmatprep.subr.bf16.mxu0 0
  %70 = vmatpush1.bf16.msra.mxu0 0
  %71 = vmatprep.subr.bf16.mxu0 0
  %72 = vmatpush1.bf16.msra.mxu0 0
  %73 = vmatprep.subr.bf16.mxu0 0
  %74 = vmatpush1.bf16.msra.mxu0 0
  %75 = vmatprep.subr.bf16.mxu0 0
  %76 = vmatpush1.bf16.msra.mxu0 0
  %77 = vmatprep.subr.bf16.mxu0 0
  %78 = vmatpush1.bf16.msra.mxu0 0
  %79 = vmatprep.subr.bf16.mxu0 0
  %80 = vmatpush1.bf16.msra.mxu0 0
  %81 = vmatprep.subr.bf16.mxu0 0
  %82 = vmatpush1.bf16.msra.mxu0 0
  %83 = vmatprep.mubr.bf16.mxu0 0
  %84 = vmatmul.mubr.bf16.gmra.mrb[0].mxu0 %v49
  %v85 = vpop.f32.mrb[0].mxu0
  %v86 = vadd.f32 %v33, %v85
  %v87 = vpop.f32.mrb[0].mxu0
  %v88 = vpop.f32.mrb[0].mxu0
  %v89 = vadd.f32 %v33, %v88
  %v90 = vpop.f32.mrb[0].mxu0
  %91 = vdwg.mxu0
  %v92 = vpack.c.bf16 %v89, %v86
  %v93 = vtanh.bf16.pop %v92
  %v94 = vld [vmem:[%s3] sm:$0xf]
  %v95 = vld [vmem:[%s3 + $0x4] sm:$0xf]
  %v96 = vld [vmem:[%s3 + $0x8] sm:$0xf]
  %v97 = vld [vmem:[%s3 + $0xc] sm:$0xf]
  %v98 = vld [vmem:[%s3 + $0x10] sm:$0xf]
  %v99 = vld [vmem:[%s3 + $0x14] sm:$0xf]
  %v100 = vld [vmem:[%s3 + $0x18] sm:$0xf]
  %v101 = vld [vmem:[%s3 + $0x1c] sm:$0xf]
  %v102 = vld [vmem:[%s4] sm:$0x1]
  %v104 = vlaneseq
  %v105 = vshrl.u32 %v104, 7
  %v106 = vsub.s32 0, %v105
  %v107 = vrot.slane %v102, %v106
  %v117 = vunpack.c.l.b16 %v94
  %v118 = vunpack.c.l.b16 %v95
  %v119 = vunpack.c.l.b16 %v96
  %v120 = vunpack.c.l.b16 %v97
  %v121 = vunpack.c.l.b16 %v98
  %v122 = vunpack.c.l.b16 %v99
  %v123 = vunpack.c.l.b16 %v100
  %v124 = vunpack.c.l.b16 %v101
  %v125 = vpack.c.b16 %v118, %v117
  %v126 = vpack.c.b16 %v120, %v119
  %v127 = vpack.c.b16 %v122, %v121
  %v128 = vpack.c.b16 %v124, %v123
  %vm133 = vcmask 523264
  %v135 = vsel %vm133, %v93, 0
  %137 = vmatprep.subr.bf16.mxu0 0
  %138 = vmatpush1.bf16.msra.mxu0 %v125
  %139 = vmatprep.subr.bf16.mxu0 0
  %140 = vmatpush1.bf16.msra.mxu0 %v126
  %141 = vmatprep.subr.bf16.mxu0 0
  %142 = vmatpush1.bf16.msra.mxu0 %v127
  %143 = vmatprep.subr.bf16.mxu0 0
  %144 = vmatpush1.bf16.msra.mxu0 %v128
  %145 = vmatprep.subr.bf16.mxu0 0
  %146 = vmatpush1.bf16.msra.mxu0 0
  %147 = vmatprep.subr.bf16.mxu0 0
  %148 = vmatpush1.bf16.msra.mxu0 0
  %149 = vmatprep.subr.bf16.mxu0 0
  %150 = vmatpush1.bf16.msra.mxu0 0
  %151 = vmatprep.subr.bf16.mxu0 0
  %152 = vmatpush1.bf16.msra.mxu0 0
  %153 = vmatprep.subr.bf16.mxu0 0
  %154 = vmatpush1.bf16.msra.mxu0 0
  %155 = vmatprep.subr.bf16.mxu0 0
  %156 = vmatpush1.bf16.msra.mxu0 0
  %157 = vmatprep.subr.bf16.mxu0 0
  %158 = vmatpush1.bf16.msra.mxu0 0
  %159 = vmatprep.subr.bf16.mxu0 0
  %160 = vmatpush1.bf16.msra.mxu0 0
  %161 = vmatprep.subr.bf16.mxu0 0
  %162 = vmatpush1.bf16.msra.mxu0 0
  %163 = vmatprep.subr.bf16.mxu0 0
  %164 = vmatpush1.bf16.msra.mxu0 0
  %165 = vmatprep.subr.bf16.mxu0 0
  %166 = vmatpush1.bf16.msra.mxu0 0
  %167 = vmatprep.subr.bf16.mxu0 0
  %168 = vmatpush1.bf16.msra.mxu0 0
  %169 = vmatprep.mubr.bf16.mxu0 0
  %170 = vmatmul.mubr.bf16.gmra.mrb[0].mxu0 %v135
  %v171 = vpop.f32.mrb[0].mxu0
  %v172 = vadd.f32 %v107, %v171
  %v173 = vpop.f32.mrb[0].mxu0
  %v174 = vpop.f32.mrb[0].mxu0
  %v175 = vadd.f32 %v107, %v174
  %v176 = vpop.f32.mrb[0].mxu0
  %177 = vdwg.mxu0
  %178 = vst [vmem:[%s5] sm:$0xff] %v172
  %179 = vst [vmem:[%s5 + $0x8] sm:$0xff] %v175
  // Predicated region
  $region22: #{classification_head_forward.1} parent=0 // pred_check
    _
  $region23: #{classification_head_forward.1} parent=0 // pred_check_branch
    %181 = sbr.rel (0) target = $region25
  $region24: #{classification_head_forward.1} parent=0 // pred_region
    _
  $region25: #{classification_head_forward.1} parent=0 // pred_fallthru
    _
  // Predicated region
  $region26: #{classification_head_forward.1} parent=0 // pred_check
    _
  $region27: #{classification_head_forward.1} parent=0 // pred_check_branch
    %183 = sbr.rel (0) target = $region29
  $region28: #{classification_head_forward.1} parent=0 // pred_region
    _
  $region29: #{classification_head_forward.1} parent=0 // pred_fallthru
    _

</llo_original>
